<compile_context>
chip_gen: v7x
topology: tpu7x:2x2x1
jax: 0.10.0
libtpu: 0.0.40
codegen_flags: <defaults>
</compile_context>

<pallas_src>
import jax
import jax.numpy as jnp
from jax.experimental import pallas as pl
from jax.experimental.pallas import tpu as pltpu


_LANE = 128


def _round_up(x, m):
    return ((x + m - 1) // m) * m


def _mlp_kernel(x_ref, w1_ref, b1_ref, ws_ref, bs_ref,
                w3_ref, b3_ref, w5_ref, b5_ref, o_ref):
    # fc1 in f32 (x comes straight from HBM as f32, single read).  Later
    # layers (K = 128 padded hidden) use bf16 MXU operands, f32 accumulation;
    # bias adds + ReLU stay f32 on the VPU.
    x = x_ref[...]                                                    # f32

    h = jnp.dot(x, w1_ref[...], preferred_element_type=jnp.float32)
    h = jnp.maximum(h + b1_ref[...], 0.0)                            # relu(fc1)

    h = jnp.dot(h.astype(jnp.bfloat16), ws_ref[...],
                preferred_element_type=jnp.float32)
    h = jnp.maximum(h + bs_ref[...], 0.0)                            # relu(shared_fc) #1

    h = jnp.dot(h.astype(jnp.bfloat16), w3_ref[...],
                preferred_element_type=jnp.float32)
    h = jnp.maximum(h + b3_ref[...], 0.0)                            # relu(fc3)

    h = jnp.dot(h.astype(jnp.bfloat16), ws_ref[...],
                preferred_element_type=jnp.float32)
    h = jnp.maximum(h + bs_ref[...], 0.0)                            # relu(shared_fc) #2

    out = jnp.dot(h.astype(jnp.bfloat16), w5_ref[...],
                  preferred_element_type=jnp.float32) + b5_ref[...]  # fc5 (no relu)
    o_ref[...] = out.astype(o_ref.dtype)


def prepare_params(params):
    """One-time weight prep: pad hidden/class dims to 128 lanes, cast to bf16.

    Call once at init and reuse; this keeps per-forward launches free of the
    weight cast/pad XLA kernels that would otherwise re-read every weight
    from HBM on each call.
    """
    w1, b1 = params["w1"], params["b1"]
    ws, bs = params["ws"], params["bs"]
    w3, b3 = params["w3"], params["b3"]
    w5, b5 = params["w5"], params["b5"]

    hidden = w1.shape[1]
    num_classes = w5.shape[1]
    h_pad = _round_up(hidden, _LANE)
    n_pad = _round_up(num_classes, _LANE)

    def pad2(a, rows, cols):
        return jnp.pad(a, ((0, rows - a.shape[0]), (0, cols - a.shape[1])))

    return {
        # fc1 weight stays f32: preserves precision of the long K reduction.
        "w1": pad2(w1, w1.shape[0], h_pad).astype(jnp.float32),
        "b1": pad2(b1, 1, h_pad).astype(jnp.float32),
        # short-K layers: bf16 MXU operands (zero padding is exact under ReLU).
        "ws": pad2(ws, h_pad, h_pad).astype(jnp.bfloat16),
        "bs": pad2(bs, 1, h_pad).astype(jnp.float32),
        "w3": pad2(w3, h_pad, h_pad).astype(jnp.bfloat16),
        "b3": pad2(b3, 1, h_pad).astype(jnp.float32),
        "w5": pad2(w5, h_pad, n_pad).astype(jnp.bfloat16),
        "b5": pad2(b5, 1, n_pad).astype(jnp.float32),
    }


def mlp_shared_weights(x, prepped, num_classes, *, max_block_b=1024):
    """x: [B, C, H, W] float32.  prepped: output of prepare_params()."""
    B = x.shape[0]
    x2d = x.reshape(B, -1).astype(jnp.float32)   # == torch .view(B, -1)
    in_features = x2d.shape[1]

    w1, b1 = prepped["w1"], prepped["b1"]
    ws, bs = prepped["ws"], prepped["bs"]
    w3, b3 = prepped["w3"], prepped["b3"]
    w5, b5 = prepped["w5"], prepped["b5"]
    h_pad = w1.shape[1]
    n_pad = w5.shape[1]

    # Batch tile: 512-1024 is the HBM-roofline sweet spot; cap at ~B/2 so the
    # "parallel" grid axis has >=2 steps (v7x dual-TensorCore sharding) when B
    # allows.  Tiny B uses a single full-extent block (always a legal block
    # shape).  Ragged last tile handled by Pallas partial-block masking.
    if B <= 16:
        block_b = B
    else:
        block_b = min(max_block_b, _round_up(pl.cdiv(B, 2), 16))
    grid = (pl.cdiv(B, block_b),)

    def const_spec(shape):
        # whole array, same block every grid step -> stays VMEM-resident
        return pl.BlockSpec(shape, lambda i: tuple(0 for _ in shape))

    # Double-buffered x + out tiles, resident weights, plus headroom; set
    # explicitly so big tiles still fit under v5e's 16 MiB scoped default.
    vmem_need = (2 * block_b * in_features * 4       # x tiles (f32)
                 + 2 * block_b * n_pad * 4           # out tiles (f32)
                 + in_features * h_pad * 4           # w1 (f32)
                 + 3 * h_pad * h_pad * 2             # ws/w3/w5 (bf16)
                 + 4 * max(h_pad, n_pad) * 4)        # biases
    vmem_limit = int(min(max(vmem_need * 3 // 2, 16 << 20), 48 << 20))

    out = pl.pallas_call(
        _mlp_kernel,
        out_shape=jax.ShapeDtypeStruct((B, n_pad), jnp.float32),
        grid=grid,
        in_specs=[
            pl.BlockSpec((block_b, in_features), lambda i: (i, 0)),   # x tile
            const_spec(w1.shape), const_spec(b1.shape),
            const_spec(ws.shape), const_spec(bs.shape),
            const_spec(w3.shape), const_spec(b3.shape),
            const_spec(w5.shape), const_spec(b5.shape),
        ],
        out_specs=pl.BlockSpec((block_b, n_pad), lambda i: (i, 0)),
        compiler_params=pltpu.CompilerParams(
            dimension_semantics=("parallel",),
            vmem_limit_bytes=vmem_limit),
    )(x2d, w1, b1, ws, bs, w3, b3, w5, b5)

    return out[:, :num_classes]


def _reference(x, params):
    """Pure-JAX f32 reference mirroring the PyTorch module."""
    h = x.reshape(x.shape[0], -1)
    h = jax.nn.relu(h @ params["w1"] + params["b1"])
    h = jax.nn.relu(h @ params["ws"] + params["bs"])
    h = jax.nn.relu(h @ params["w3"] + params["b3"])
    h = jax.nn.relu(h @ params["ws"] + params["bs"])
    return h @ params["w5"] + params["b5"]


def _init_params(key, input_size, hidden_size, num_classes):
    """Deterministic init; weights stored as (in_features, out_features)."""
    ks = jax.random.split(key, 8)

    def linear(kw, kb, fan_in, fan_out):
        bound = 1.0 / jnp.sqrt(fan_in)                 # torch default init range
        w = jax.random.uniform(kw, (fan_in, fan_out), jnp.float32, -bound, bound)
        b = jax.random.uniform(kb, (1, fan_out), jnp.float32, -bound, bound)
        return w, b

    w1, b1 = linear(ks[0], ks[1], input_size, hidden_size)
    ws, bs = linear(ks[2], ks[3], hidden_size, hidden_size)
    w3, b3 = linear(ks[4], ks[5], hidden_size, hidden_size)
    w5, b5 = linear(ks[6], ks[7], hidden_size, num_classes)
    return {"w1": w1, "b1": b1, "ws": ws, "bs": bs,
            "w3": w3, "b3": b3, "w5": w5, "b5": b5}


if __name__ == "__main__":
    key = jax.random.PRNGKey(0)
    k_x, k_p = jax.random.split(key)

    B, C, H, W = 2, 4, 16, 16            # input x: [2, 4, 16, 16]  (NCHW)
    input_size = C * H * W               # 1024
    hidden_size = 32
    num_classes = 10

    x = jax.random.normal(k_x, (B, C, H, W), dtype=jnp.float32)
    params = _init_params(k_p, input_size, hidden_size, num_classes)

    prepped = prepare_params(params)     # one-time pad/cast, off the fwd path

    forward = jax.jit(mlp_shared_weights, static_argnums=(2,))
    out = jax.block_until_ready(forward(x, prepped, num_classes))

    ref = _reference(x, params)
    assert out.shape == (B, num_classes)
    # Middle/last layers use bf16 MXU operands (f32 accumulation); fc1 is f32.
    assert jnp.allclose(out, ref, atol=3e-2, rtol=3e-2), "mismatch vs reference"
    print("KERNEL_OK")
</pallas_src>

<mosaic_0001>
module attributes {stable_mosaic.version = 11 : i64} {
  func.func @_mlp_kernel(%arg0: i32, %arg1: memref<2x1024xf32, #tpu.memory_space<vmem>>, %arg2: memref<1024x128xf32, #tpu.memory_space<vmem>>, %arg3: memref<1x128xf32, #tpu.memory_space<vmem>>, %arg4: memref<128x128xbf16, #tpu.memory_space<vmem>>, %arg5: memref<1x128xf32, #tpu.memory_space<vmem>>, %arg6: memref<128x128xbf16, #tpu.memory_space<vmem>>, %arg7: memref<1x128xf32, #tpu.memory_space<vmem>>, %arg8: memref<128x128xbf16, #tpu.memory_space<vmem>>, %arg9: memref<1x128xf32, #tpu.memory_space<vmem>>, %arg10: memref<2x128xf32, #tpu.memory_space<vmem>>) attributes {dimension_semantics = [#tpu.dimension_semantics<parallel>], iteration_bounds = array<i64: 1>, scalar_prefetch = 0 : i64, scratch_operands = 0 : i64, tpu.core_type = #tpu.core_type<tc>, window_params = [{transform_indices = @transform_0, window_bounds = array<i64: 2, 1024>}, {pipeline_mode = #tpu.pipeline_mode<synchronous>, transform_indices = @transform_1, window_bounds = array<i64: 1024, 128>}, {pipeline_mode = #tpu.pipeline_mode<synchronous>, transform_indices = @transform_2, window_bounds = array<i64: 1, 128>}, {pipeline_mode = #tpu.pipeline_mode<synchronous>, transform_indices = @transform_3, window_bounds = array<i64: 128, 128>}, {pipeline_mode = #tpu.pipeline_mode<synchronous>, transform_indices = @transform_4, window_bounds = array<i64: 1, 128>}, {pipeline_mode = #tpu.pipeline_mode<synchronous>, transform_indices = @transform_5, window_bounds = array<i64: 128, 128>}, {pipeline_mode = #tpu.pipeline_mode<synchronous>, transform_indices = @transform_6, window_bounds = array<i64: 1, 128>}, {pipeline_mode = #tpu.pipeline_mode<synchronous>, transform_indices = @transform_7, window_bounds = array<i64: 128, 128>}, {pipeline_mode = #tpu.pipeline_mode<synchronous>, transform_indices = @transform_8, window_bounds = array<i64: 1, 128>}, {transform_indices = @transform_9, window_bounds = array<i64: 2, 128>}]} {
    %c0 = arith.constant 0 : index
    %c0_0 = arith.constant 0 : index
    %0 = vector.load %arg1[%c0, %c0_0] : memref<2x1024xf32, #tpu.memory_space<vmem>>, vector<2x1024xf32>
    %c0_1 = arith.constant 0 : index
    %c0_2 = arith.constant 0 : index
    %1 = vector.load %arg2[%c0_1, %c0_2] : memref<1024x128xf32, #tpu.memory_space<vmem>>, vector<1024x128xf32>
    %cst = arith.constant dense<0.000000e+00> : vector<2x128xf32>
    %2 = tpu.matmul %0, %1, %cst {dimension_numbers = #tpu.dot_dimension_numbers<[1], [0], [0], [1], [0, 0, 1, 1], [], []>} : vector<2x1024xf32>, vector<1024x128xf32>, vector<2x128xf32> -> vector<2x128xf32>
    %c0_3 = arith.constant 0 : index
    %c0_4 = arith.constant 0 : index
    %3 = vector.load %arg3[%c0_3, %c0_4] : memref<1x128xf32, #tpu.memory_space<vmem>>, vector<1x128xf32>
    %4 = vector.broadcast %3 : vector<1x128xf32> to vector<2x128xf32>
    %5 = arith.addf %2, %4 : vector<2x128xf32>
    %cst_5 = arith.constant 0.000000e+00 : f32
    %6 = vector.broadcast %cst_5 : f32 to vector<2x128xf32>
    %7 = arith.maximumf %5, %6 : vector<2x128xf32>
    %8 = arith.truncf %7 : vector<2x128xf32> to vector<2x128xbf16>
    %c0_6 = arith.constant 0 : index
    %c0_7 = arith.constant 0 : index
    %9 = vector.load %arg4[%c0_6, %c0_7] : memref<128x128xbf16, #tpu.memory_space<vmem>>, vector<128x128xbf16>
    %cst_8 = arith.constant dense<0.000000e+00> : vector<2x128xf32>
    %10 = tpu.matmul %8, %9, %cst_8 {dimension_numbers = #tpu.dot_dimension_numbers<[1], [0], [0], [1], [0, 0, 1, 1], [], []>} : vector<2x128xbf16>, vector<128x128xbf16>, vector<2x128xf32> -> vector<2x128xf32>
    %c0_9 = arith.constant 0 : index
    %c0_10 = arith.constant 0 : index
    %11 = vector.load %arg5[%c0_9, %c0_10] : memref<1x128xf32, #tpu.memory_space<vmem>>, vector<1x128xf32>
    %12 = vector.broadcast %11 : vector<1x128xf32> to vector<2x128xf32>
    %13 = arith.addf %10, %12 : vector<2x128xf32>
    %cst_11 = arith.constant 0.000000e+00 : f32
    %14 = vector.broadcast %cst_11 : f32 to vector<2x128xf32>
    %15 = arith.maximumf %13, %14 : vector<2x128xf32>
    %16 = arith.truncf %15 : vector<2x128xf32> to vector<2x128xbf16>
    %c0_12 = arith.constant 0 : index
    %c0_13 = arith.constant 0 : index
    %17 = vector.load %arg6[%c0_12, %c0_13] : memref<128x128xbf16, #tpu.memory_space<vmem>>, vector<128x128xbf16>
    %cst_14 = arith.constant dense<0.000000e+00> : vector<2x128xf32>
    %18 = tpu.matmul %16, %17, %cst_14 {dimension_numbers = #tpu.dot_dimension_numbers<[1], [0], [0], [1], [0, 0, 1, 1], [], []>} : vector<2x128xbf16>, vector<128x128xbf16>, vector<2x128xf32> -> vector<2x128xf32>
    %c0_15 = arith.constant 0 : index
    %c0_16 = arith.constant 0 : index
    %19 = vector.load %arg7[%c0_15, %c0_16] : memref<1x128xf32, #tpu.memory_space<vmem>>, vector<1x128xf32>
    %20 = vector.broadcast %19 : vector<1x128xf32> to vector<2x128xf32>
    %21 = arith.addf %18, %20 : vector<2x128xf32>
    %cst_17 = arith.constant 0.000000e+00 : f32
    %22 = vector.broadcast %cst_17 : f32 to vector<2x128xf32>
    %23 = arith.maximumf %21, %22 : vector<2x128xf32>
    %24 = arith.truncf %23 : vector<2x128xf32> to vector<2x128xbf16>
    %c0_18 = arith.constant 0 : index
    %c0_19 = arith.constant 0 : index
    %25 = vector.load %arg4[%c0_18, %c0_19] : memref<128x128xbf16, #tpu.memory_space<vmem>>, vector<128x128xbf16>
    %cst_20 = arith.constant dense<0.000000e+00> : vector<2x128xf32>
    %26 = tpu.matmul %24, %25, %cst_20 {dimension_numbers = #tpu.dot_dimension_numbers<[1], [0], [0], [1], [0, 0, 1, 1], [], []>} : vector<2x128xbf16>, vector<128x128xbf16>, vector<2x128xf32> -> vector<2x128xf32>
    %c0_21 = arith.constant 0 : index
    %c0_22 = arith.constant 0 : index
    %27 = vector.load %arg5[%c0_21, %c0_22] : memref<1x128xf32, #tpu.memory_space<vmem>>, vector<1x128xf32>
    %28 = vector.broadcast %27 : vector<1x128xf32> to vector<2x128xf32>
    %29 = arith.addf %26, %28 : vector<2x128xf32>
    %cst_23 = arith.constant 0.000000e+00 : f32
    %30 = vector.broadcast %cst_23 : f32 to vector<2x128xf32>
    %31 = arith.maximumf %29, %30 : vector<2x128xf32>
    %32 = arith.truncf %31 : vector<2x128xf32> to vector<2x128xbf16>
    %c0_24 = arith.constant 0 : index
    %c0_25 = arith.constant 0 : index
    %33 = vector.load %arg8[%c0_24, %c0_25] : memref<128x128xbf16, #tpu.memory_space<vmem>>, vector<128x128xbf16>
    %cst_26 = arith.constant dense<0.000000e+00> : vector<2x128xf32>
    %34 = tpu.matmul %32, %33, %cst_26 {dimension_numbers = #tpu.dot_dimension_numbers<[1], [0], [0], [1], [0, 0, 1, 1], [], []>} : vector<2x128xbf16>, vector<128x128xbf16>, vector<2x128xf32> -> vector<2x128xf32>
    %c0_27 = arith.constant 0 : index
    %c0_28 = arith.constant 0 : index
    %35 = vector.load %arg9[%c0_27, %c0_28] : memref<1x128xf32, #tpu.memory_space<vmem>>, vector<1x128xf32>
    %36 = vector.broadcast %35 : vector<1x128xf32> to vector<2x128xf32>
    %37 = arith.addf %34, %36 : vector<2x128xf32>
    %c0_29 = arith.constant 0 : index
    %c0_30 = arith.constant 0 : index
    %38 = vector.load %arg10[%c0_29, %c0_30] : memref<2x128xf32, #tpu.memory_space<vmem>>, vector<2x128xf32>
    tpu.vector_store %arg10[%c0_29, %c0_30], %37 {strides = array<i32>} : memref<2x128xf32, #tpu.memory_space<vmem>>, vector<2x128xf32>,
    return
  }
  func.func @transform_0(%arg0: i32) -> (i32, i32) {
    %c0_i32 = arith.constant 0 : i32
    %c0_i32_0 = arith.constant 0 : i32
    return %arg0, %c0_i32 : i32, i32
  }
  func.func @transform_1(%arg0: i32) -> (i32, i32) {
    %c0_i32 = arith.constant 0 : i32
    %c0_i32_0 = arith.constant 0 : i32
    %c0_i32_1 = arith.constant 0 : i32
    return %c0_i32, %c0_i32_0 : i32, i32
  }
  func.func @transform_2(%arg0: i32) -> (i32, i32) {
    %c0_i32 = arith.constant 0 : i32
    %c0_i32_0 = arith.constant 0 : i32
    %c0_i32_1 = arith.constant 0 : i32
    return %c0_i32, %c0_i32_0 : i32, i32
  }
  func.func @transform_3(%arg0: i32) -> (i32, i32) {
    %c0_i32 = arith.constant 0 : i32
    %c0_i32_0 = arith.constant 0 : i32
    %c0_i32_1 = arith.constant 0 : i32
    return %c0_i32, %c0_i32_0 : i32, i32
  }
  func.func @transform_4(%arg0: i32) -> (i32, i32) {
    %c0_i32 = arith.constant 0 : i32
    %c0_i32_0 = arith.constant 0 : i32
    %c0_i32_1 = arith.constant 0 : i32
    return %c0_i32, %c0_i32_0 : i32, i32
  }
  func.func @transform_5(%arg0: i32) -> (i32, i32) {
    %c0_i32 = arith.constant 0 : i32
    %c0_i32_0 = arith.constant 0 : i32
    %c0_i32_1 = arith.constant 0 : i32
    return %c0_i32, %c0_i32_0 : i32, i32
  }
  func.func @transform_6(%arg0: i32) -> (i32, i32) {
    %c0_i32 = arith.constant 0 : i32
    %c0_i32_0 = arith.constant 0 : i32
    %c0_i32_1 = arith.constant 0 : i32
    return %c0_i32, %c0_i32_0 : i32, i32
  }
  func.func @transform_7(%arg0: i32) -> (i32, i32) {
    %c0_i32 = arith.constant 0 : i32
    %c0_i32_0 = arith.constant 0 : i32
    %c0_i32_1 = arith.constant 0 : i32
    return %c0_i32, %c0_i32_0 : i32, i32
  }
  func.func @transform_8(%arg0: i32) -> (i32, i32) {
    %c0_i32 = arith.constant 0 : i32
    %c0_i32_0 = arith.constant 0 : i32
    %c0_i32_1 = arith.constant 0 : i32
    return %c0_i32, %c0_i32_0 : i32, i32
  }
  func.func @transform_9(%arg0: i32) -> (i32, i32) {
    %c0_i32 = arith.constant 0 : i32
    %c0_i32_0 = arith.constant 0 : i32
    return %arg0, %c0_i32 : i32, i32
  }
}

</mosaic_0001>

<llo_original>
// kernel: mlp_shared_weights.1
$region0: #{mlp_shared_weights.1}
  #allocation0 [shape = 'u32[]', space=smem, size = 0x4, offset = 0x4, fixed_abs, tag = 'smem constant byte address 0x4 - core index']
  #allocation1 [shape = 'u32[144,128]{1,0:T(1,128)}', space=vmem, size = 0x12000, scoped, tag = 'internal scratch']
  %s0 = inlined_call_operand.vmem [shape: f32[2,1024], index: 0, kind: input, shape index: {}]
  %s1 = inlined_call_operand.hbm [shape: f32[1024,128], index: 1, kind: input, shape index: {}]
  %s2 = inlined_call_operand.vmem [shape: f32[1,128], index: 2, kind: input, shape index: {}]
  %s3 = inlined_call_operand.vmem [shape: bf16[128,128], index: 3, kind: input, shape index: {}]
  %s4 = inlined_call_operand.vmem [shape: f32[1,128], index: 4, kind: input, shape index: {}]
  %s5 = inlined_call_operand.vmem [shape: bf16[128,128], index: 5, kind: input, shape index: {}]
  %s6 = inlined_call_operand.vmem [shape: f32[1,128], index: 6, kind: input, shape index: {}]
  %s7 = inlined_call_operand.hbm [shape: bf16[128,128], index: 7, kind: input, shape index: {}]
  %s8 = inlined_call_operand.vmem [shape: f32[1,128], index: 8, kind: input, shape index: {}]
  %s9 = inlined_call_operand.hbm [shape: f32[2,128], index: 9, kind: output, shape index: {}]
  %s10 = sld [smem:[#allocation0]]
  $region54: #{mlp_shared_weights.1} parent=0
    _
  %s12 = ssub.s32 1, %s10
  %s13 = scalar_select 0, %s12, %s10
  $region1: #{mlp_shared_weights.1} parent=0
    #allocation2 [shape = 'u8[524288]{0}', space=vmem, size = 0x80000, scoped, tag = 'input window, operand 1, single buffered']
    #allocation3 [shape = 's32[1]{0}', space=sflag, size = 0x4, scoped, tag = 'scoped memory for mlp_shared_weights.1']
    #allocation4 [shape = 's32[1]{0}', space=sflag, size = 0x4, scoped, tag = 'scoped memory for mlp_shared_weights.1']
    #allocation5 [shape = 'u8[32768]{0}', space=vmem, size = 0x8000, scoped, tag = 'input window, operand 7, single buffered']
    #allocation6 [shape = 's32[1]{0}', space=sflag, size = 0x4, scoped, tag = 'scoped memory for mlp_shared_weights.1']
    #allocation7 [shape = 'u8[1024]{0}', space=vmem, size = 0x400, scoped, tag = 'output window, operand 0, single buffered']
    %14 = vsyncpa [#allocation3], 0
    %15 = vsyncpa [#allocation6], 0
    %16 = vsyncpa [#allocation4], 0
    // Predicated region
    $region2: #{mlp_shared_weights.1} parent=1 // pred_check
      _
    $region3: #{mlp_shared_weights.1} parent=1 // pred_check_branch
      %18 = sbr.rel (0) target = $region5
    $region4: #{mlp_shared_weights.1} parent=1 // pred_region
      _
    $region5: #{mlp_shared_weights.1} parent=1 // pred_fallthru
      _
    // Predicated region
    $region6: #{mlp_shared_weights.1} parent=1 // pred_check
      _
    $region7: #{mlp_shared_weights.1} parent=1 // pred_check_branch
      %20 = sbr.rel (0) target = $region9
    $region8: #{mlp_shared_weights.1} parent=1 // pred_region
      %s22 = ssub.s32 16384, 16384
      %23 = vsyncadd [#allocation3], %s22
      %s24 = sshll.u32 [#allocation2], 4
      %s25 = int_to_ptr.vmem [resolvable:$true] %s24
      %30 = dma.hbm_to_vmem [thread:$0]  %s1, 16384, %s25, [#allocation3], 128, 128, 8
    $region9: #{mlp_shared_weights.1} parent=1 // pred_fallthru
      _
    // Predicated region
    $region10: #{mlp_shared_weights.1} parent=1 // pred_check
      _
    $region11: #{mlp_shared_weights.1} parent=1 // pred_check_branch
      %32 = sbr.rel (0) target = $region13
    $region12: #{mlp_shared_weights.1} parent=1 // pred_region
      _
    $region13: #{mlp_shared_weights.1} parent=1 // pred_fallthru
      _
    // Predicated region
    $region14: #{mlp_shared_weights.1} parent=1 // pred_check
      _
    $region15: #{mlp_shared_weights.1} parent=1 // pred_check_branch
      %34 = sbr.rel (0) target = $region17
    $region16: #{mlp_shared_weights.1} parent=1 // pred_region
      _
    $region17: #{mlp_shared_weights.1} parent=1 // pred_fallthru
      _
    // Predicated region
    $region18: #{mlp_shared_weights.1} parent=1 // pred_check
      _
    $region19: #{mlp_shared_weights.1} parent=1 // pred_check_branch
      %36 = sbr.rel (0) target = $region21
    $region20: #{mlp_shared_weights.1} parent=1 // pred_region
      _
    $region21: #{mlp_shared_weights.1} parent=1 // pred_fallthru
      _
    // Predicated region
    $region22: #{mlp_shared_weights.1} parent=1 // pred_check
      _
    $region23: #{mlp_shared_weights.1} parent=1 // pred_check_branch
      %38 = sbr.rel (0) target = $region25
    $region24: #{mlp_shared_weights.1} parent=1 // pred_region
      _
    $region25: #{mlp_shared_weights.1} parent=1 // pred_fallthru
      _
    // Predicated region
    $region26: #{mlp_shared_weights.1} parent=1 // pred_check
      _
    $region27: #{mlp_shared_weights.1} parent=1 // pred_check_branch
      %40 = sbr.rel (0) target = $region29
    $region28: #{mlp_shared_weights.1} parent=1 // pred_region
      _
    $region29: #{mlp_shared_weights.1} parent=1 // pred_fallthru
      _
    // Predicated region
    $region30: #{mlp_shared_weights.1} parent=1 // pred_check
      _
    $region31: #{mlp_shared_weights.1} parent=1 // pred_check_branch
      %42 = sbr.rel (0) target = $region33
    $region32: #{mlp_shared_weights.1} parent=1 // pred_region
      %s44 = ssub.s32 1024, 1024
      %45 = vsyncadd [#allocation6], %s44
      %s46 = sshll.u32 [#allocation5], 4
      %s47 = int_to_ptr.vmem [resolvable:$true] %s46
      %52 = dma.hbm_to_vmem [thread:$0]  %s7, 1024, %s47, [#allocation6], 64, 64, 4
    $region33: #{mlp_shared_weights.1} parent=1 // pred_fallthru
      _
    // Predicated region
    $region34: #{mlp_shared_weights.1} parent=1 // pred_check
      _
    $region35: #{mlp_shared_weights.1} parent=1 // pred_check_branch
      %54 = sbr.rel (0) target = $region37
    $region36: #{mlp_shared_weights.1} parent=1 // pred_region
      _
    $region37: #{mlp_shared_weights.1} parent=1 // pred_fallthru
      _
    // Predicated region
    $region38: #{mlp_shared_weights.1} parent=1 // pred_check
      _
    $region39: #{mlp_shared_weights.1} parent=1 // pred_check_branch
      %56 = sbr.rel (0) target = $region41
    $region40: #{mlp_shared_weights.1} parent=1 // pred_region
      %57 = dma.done [#allocation3], 16384
    $region41: #{mlp_shared_weights.1} parent=1 // pred_fallthru
      _
    // Predicated region
    $region42: #{mlp_shared_weights.1} parent=1 // pred_check
      _
    $region43: #{mlp_shared_weights.1} parent=1 // pred_check_branch
      %59 = sbr.rel (0) target = $region45
    $region44: #{mlp_shared_weights.1} parent=1 // pred_region
      %60 = dma.done [#allocation6], 1024
    $region45: #{mlp_shared_weights.1} parent=1 // pred_fallthru
      _
    %v62 = vld [vmem:[%s0] sm:$0xff]
    %v63 = vld [vmem:[%s0 + $0x8] sm:$0xff]
    %v64 = vld [vmem:[#allocation2] sm:$0xff]
    %v65 = vld [vmem:[#allocation2 + $0x8] sm:$0xff]
    %v66 = vld [vmem:[#allocation2 + $0x10] sm:$0xff]
    %v67 = vld [vmem:[#allocation2 + $0x18] sm:$0xff]
    %v68 = vld [vmem:[#allocation2 + $0x20] sm:$0xff]
    %v69 = vld [vmem:[#allocation2 + $0x28] sm:$0xff]
    %v70 = vld [vmem:[#allocation2 + $0x30] sm:$0xff]
    %v71 = vld [vmem:[#allocation2 + $0x38] sm:$0xff]
    %v72 = vld [vmem:[#allocation2 + $0x40] sm:$0xff]
    %v73 = vld [vmem:[#allocation2 + $0x48] sm:$0xff]
    %v74 = vld [vmem:[#allocation2 + $0x50] sm:$0xff]
    %v75 = vld [vmem:[#allocation2 + $0x58] sm:$0xff]
    %v76 = vld [vmem:[#allocation2 + $0x60] sm:$0xff]
    %v77 = vld [vmem:[#allocation2 + $0x68] sm:$0xff]
    %v78 = vld [vmem:[#allocation2 + $0x70] sm:$0xff]
    %v79 = vld [vmem:[#allocation2 + $0x78] sm:$0xff]
    %v80 = vld [vmem:[#allocation2 + $0x80] sm:$0xff]
    %v81 = vld [vmem:[#allocation2 + $0x88] sm:$0xff]
    %v82 = vld [vmem:[#allocation2 + $0x90] sm:$0xff]
    %v83 = vld [vmem:[#allocation2 + $0x98] sm:$0xff]
    %v84 = vld [vmem:[#allocation2 + $0xa0] sm:$0xff]
    %v85 = vld [vmem:[#allocation2 + $0xa8] sm:$0xff]
    %v86 = vld [vmem:[#allocation2 + $0xb0] sm:$0xff]
    %v87 = vld [vmem:[#allocation2 + $0xb8] sm:$0xff]
    %v88 = vld [vmem:[#allocation2 + $0xc0] sm:$0xff]
    %v89 = vld [vmem:[#allocation2 + $0xc8] sm:$0xff]
    %v90 = vld [vmem:[#allocation2 + $0xd0] sm:$0xff]
    %v91 = vld [vmem:[#allocation2 + $0xd8] sm:$0xff]
    %v92 = vld [vmem:[#allocation2 + $0xe0] sm:$0xff]
    %v93 = vld [vmem:[#allocation2 + $0xe8] sm:$0xff]
    %v94 = vld [vmem:[#allocation2 + $0xf0] sm:$0xff]
    %v95 = vld [vmem:[#allocation2 + $0xf8] sm:$0xff]
    %v96 = vld [vmem:[#allocation2 + $0x100] sm:$0xff]
    %v97 = vld [vmem:[#allocation2 + $0x108] sm:$0xff]
    %v98 = vld [vmem:[#allocation2 + $0x110] sm:$0xff]
    %v99 = vld [vmem:[#allocation2 + $0x118] sm:$0xff]
    %v100 = vld [vmem:[#allocation2 + $0x120] sm:$0xff]
    %v101 = vld [vmem:[#allocation2 + $0x128] sm:$0xff]
    %v102 = vld [vmem:[#allocation2 + $0x130] sm:$0xff]
    %v103 = vld [vmem:[#allocation2 + $0x138] sm:$0xff]
    %v104 = vld [vmem:[#allocation2 + $0x140] sm:$0xff]
    %v105 = vld [vmem:[#allocation2 + $0x148] sm:$0xff]
    %v106 = vld [vmem:[#allocation2 + $0x150] sm:$0xff]
    %v107 = vld [vmem:[#allocation2 + $0x158] sm:$0xff]
    %v108 = vld [vmem:[#allocation2 + $0x160] sm:$0xff]
    %v109 = vld [vmem:[#allocation2 + $0x168] sm:$0xff]
    %v110 = vld [vmem:[#allocation2 + $0x170] sm:$0xff]
    %v111 = vld [vmem:[#allocation2 + $0x178] sm:$0xff]
    %v112 = vld [vmem:[#allocation2 + $0x180] sm:$0xff]
    %v113 = vld [vmem:[#allocation2 + $0x188] sm:$0xff]
    %v114 = vld [vmem:[#allocation2 + $0x190] sm:$0xff]
    %v115 = vld [vmem:[#allocation2 + $0x198] sm:$0xff]
    %v116 = vld [vmem:[#allocation2 + $0x1a0] sm:$0xff]
    %v117 = vld [vmem:[#allocation2 + $0x1a8] sm:$0xff]
    %v118 = vld [vmem:[#allocation2 + $0x1b0] sm:$0xff]
    %v119 = vld [vmem:[#allocation2 + $0x1b8] sm:$0xff]
    %v120 = vld [vmem:[#allocation2 + $0x1c0] sm:$0xff]
    %v121 = vld [vmem:[#allocation2 + $0x1c8] sm:$0xff]
    %v122 = vld [vmem:[#allocation2 + $0x1d0] sm:$0xff]
    %v123 = vld [vmem:[#allocation2 + $0x1d8] sm:$0xff]
    %v124 = vld [vmem:[#allocation2 + $0x1e0] sm:$0xff]
    %v125 = vld [vmem:[#allocation2 + $0x1e8] sm:$0xff]
    %v126 = vld [vmem:[#allocation2 + $0x1f0] sm:$0xff]
    %v127 = vld [vmem:[#allocation2 + $0x1f8] sm:$0xff]
    %v128 = vld [vmem:[#allocation2 + $0x200] sm:$0xff]
    %v129 = vld [vmem:[#allocation2 + $0x208] sm:$0xff]
    %v130 = vld [vmem:[#allocation2 + $0x210] sm:$0xff]
    %v131 = vld [vmem:[#allocation2 + $0x218] sm:$0xff]
    %v132 = vld [vmem:[#allocation2 + $0x220] sm:$0xff]
    %v133 = vld [vmem:[#allocation2 + $0x228] sm:$0xff]
    %v134 = vld [vmem:[#allocation2 + $0x230] sm:$0xff]
    %v135 = vld [vmem:[#allocation2 + $0x238] sm:$0xff]
    %v136 = vld [vmem:[#allocation2 + $0x240] sm:$0xff]
    %v137 = vld [vmem:[#allocation2 + $0x248] sm:$0xff]
    %v138 = vld [vmem:[#allocation2 + $0x250] sm:$0xff]
    %v139 = vld [vmem:[#allocation2 + $0x258] sm:$0xff]
    %v140 = vld [vmem:[#allocation2 + $0x260] sm:$0xff]
    %v141 = vld [vmem:[#allocation2 + $0x268] sm:$0xff]
    %v142 = vld [vmem:[#allocation2 + $0x270] sm:$0xff]
    %v143 = vld [vmem:[#allocation2 + $0x278] sm:$0xff]
    %v144 = vld [vmem:[#allocation2 + $0x280] sm:$0xff]
    %v145 = vld [vmem:[#allocation2 + $0x288] sm:$0xff]
    %v146 = vld [vmem:[#allocation2 + $0x290] sm:$0xff]
    %v147 = vld [vmem:[#allocation2 + $0x298] sm:$0xff]
    %v148 = vld [vmem:[#allocation2 + $0x2a0] sm:$0xff]
    %v149 = vld [vmem:[#allocation2 + $0x2a8] sm:$0xff]
    %v150 = vld [vmem:[#allocation2 + $0x2b0] sm:$0xff]
    %v151 = vld [vmem:[#allocation2 + $0x2b8] sm:$0xff]
    %v152 = vld [vmem:[#allocation2 + $0x2c0] sm:$0xff]
    %v153 = vld [vmem:[#allocation2 + $0x2c8] sm:$0xff]
    %v154 = vld [vmem:[#allocation2 + $0x2d0] sm:$0xff]
    %v155 = vld [vmem:[#allocation2 + $0x2d8] sm:$0xff]
    %v156 = vld [vmem:[#allocation2 + $0x2e0] sm:$0xff]
    %v157 = vld [vmem:[#allocation2 + $0x2e8] sm:$0xff]
    %v158 = vld [vmem:[#allocation2 + $0x2f0] sm:$0xff]
    %v159 = vld [vmem:[#allocation2 + $0x2f8] sm:$0xff]
    %v160 = vld [vmem:[#allocation2 + $0x300] sm:$0xff]
    %v161 = vld [vmem:[#allocation2 + $0x308] sm:$0xff]
    %v162 = vld [vmem:[#allocation2 + $0x310] sm:$0xff]
    %v163 = vld [vmem:[#allocation2 + $0x318] sm:$0xff]
    %v164 = vld [vmem:[#allocation2 + $0x320] sm:$0xff]
    %v165 = vld [vmem:[#allocation2 + $0x328] sm:$0xff]
    %v166 = vld [vmem:[#allocation2 + $0x330] sm:$0xff]
    %v167 = vld [vmem:[#allocation2 + $0x338] sm:$0xff]
    %v168 = vld [vmem:[#allocation2 + $0x340] sm:$0xff]
    %v169 = vld [vmem:[#allocation2 + $0x348] sm:$0xff]
    %v170 = vld [vmem:[#allocation2 + $0x350] sm:$0xff]
    %v171 = vld [vmem:[#allocation2 + $0x358] sm:$0xff]
    %v172 = vld [vmem:[#allocation2 + $0x360] sm:$0xff]
    %v173 = vld [vmem:[#allocation2 + $0x368] sm:$0xff]
    %v174 = vld [vmem:[#allocation2 + $0x370] sm:$0xff]
    %v175 = vld [vmem:[#allocation2 + $0x378] sm:$0xff]
    %v176 = vld [vmem:[#allocation2 + $0x380] sm:$0xff]
    %v177 = vld [vmem:[#allocation2 + $0x388] sm:$0xff]
    %v178 = vld [vmem:[#allocation2 + $0x390] sm:$0xff]
    %v179 = vld [vmem:[#allocation2 + $0x398] sm:$0xff]
    %v180 = vld [vmem:[#allocation2 + $0x3a0] sm:$0xff]
    %v181 = vld [vmem:[#allocation2 + $0x3a8] sm:$0xff]
    %v182 = vld [vmem:[#allocation2 + $0x3b0] sm:$0xff]
    %v183 = vld [vmem:[#allocation2 + $0x3b8] sm:$0xff]
    %v184 = vld [vmem:[#allocation2 + $0x3c0] sm:$0xff]
    %v185 = vld [vmem:[#allocation2 + $0x3c8] sm:$0xff]
    %v186 = vld [vmem:[#allocation2 + $0x3d0] sm:$0xff]
    %v187 = vld [vmem:[#allocation2 + $0x3d8] sm:$0xff]
    %v188 = vld [vmem:[#allocation2 + $0x3e0] sm:$0xff]
    %v189 = vld [vmem:[#allocation2 + $0x3e8] sm:$0xff]
    %v190 = vld [vmem:[#allocation2 + $0x3f0] sm:$0xff]
    %v191 = vld [vmem:[#allocation2 + $0x3f8] sm:$0xff]
    %v192 = vld [vmem:[%s2] sm:$0x1]
    %v194 = vlaneseq
    %v195 = vshrl.u32 %v194, 7
    %v196 = vsub.s32 0, %v195
    %v197 = vrot.slane %v192, %v196
    %v201 = vcombine.high %v62, %v62
    %v203 = vunpack.c.l.s4 1983009808
    %v204 = vunpack.c.0.s8 %v203
    %v205 = vlaneseq
    %v206 = vshrl.u32 %v205, 7
    %v207 = vsub.s32 %v204, %v206
    %v208 = vrot.slane %v62, %v207
    %v210 = vunpack.c.l.s4 1983009808
    %v211 = vunpack.c.0.s8 %v210
    %v212 = vlaneseq
    %v213 = vshrl.u32 %v212, 7
    %v214 = vsub.s32 %v211, %v213
    %v215 = vrot.slane %v201, %v214
    %v216 = vcombine.high %v208, %v208
    %v217 = vcombine.high %v215, %v215
    %v218 = vcombine.high %v63, %v63
    %v220 = vunpack.c.l.s4 1983009808
    %v221 = vunpack.c.0.s8 %v220
    %v222 = vlaneseq
    %v223 = vshrl.u32 %v222, 7
    %v224 = vsub.s32 %v221, %v223
    %v225 = vrot.slane %v63, %v224
    %v227 = vunpack.c.l.s4 1983009808
    %v228 = vunpack.c.0.s8 %v227
    %v229 = vlaneseq
    %v230 = vshrl.u32 %v229, 7
    %v231 = vsub.s32 %v228, %v230
    %v232 = vrot.slane %v218, %v231
    %v233 = vcombine.high %v225, %v225
    %v234 = vcombine.high %v232, %v232
    %243 = vmatprep.subr.mxu0 0.0
    %244 = vmatpush1.msra.mxu0 %v64
    %245 = vmatprep.subr.mxu0 0.0
    %246 = vmatpush1.msra.mxu0 %v65
    %247 = vmatprep.subr.mxu0 0.0
    %248 = vmatpush1.msra.mxu0 %v66
    %249 = vmatprep.subr.mxu0 0.0
    %250 = vmatpush1.msra.mxu0 %v67
    %251 = vmatprep.subr.mxu0 0.0
    %252 = vmatpush1.msra.mxu0 %v68
    %253 = vmatprep.subr.mxu0 0.0
    %254 = vmatpush1.msra.mxu0 %v69
    %255 = vmatprep.subr.mxu0 0.0
    %256 = vmatpush1.msra.mxu0 %v70
    %257 = vmatprep.subr.mxu0 0.0
    %258 = vmatpush1.msra.mxu0 %v71
    %259 = vmatprep.subr.mxu0 0.0
    %260 = vmatpush1.msra.mxu0 %v72
    %261 = vmatprep.subr.mxu0 0.0
    %262 = vmatpush1.msra.mxu0 %v73
    %263 = vmatprep.subr.mxu0 0.0
    %264 = vmatpush1.msra.mxu0 %v74
    %265 = vmatprep.subr.mxu0 0.0
    %266 = vmatpush1.msra.mxu0 %v75
    %267 = vmatprep.subr.mxu0 0.0
    %268 = vmatpush1.msra.mxu0 %v76
    %269 = vmatprep.subr.mxu0 0.0
    %270 = vmatpush1.msra.mxu0 %v77
    %271 = vmatprep.subr.mxu0 0.0
    %272 = vmatpush1.msra.mxu0 %v78
    %273 = vmatprep.subr.mxu0 0.0
    %274 = vmatpush1.msra.mxu0 %v79
    %275 = vmatprep.subr.mxu0 0.0
    %276 = vmatpush1.msra.mxu0 %v80
    %277 = vmatprep.subr.mxu0 0.0
    %278 = vmatpush1.msra.mxu0 %v81
    %279 = vmatprep.subr.mxu0 0.0
    %280 = vmatpush1.msra.mxu0 %v82
    %281 = vmatprep.subr.mxu0 0.0
    %282 = vmatpush1.msra.mxu0 %v83
    %283 = vmatprep.subr.mxu0 0.0
    %284 = vmatpush1.msra.mxu0 %v84
    %285 = vmatprep.subr.mxu0 0.0
    %286 = vmatpush1.msra.mxu0 %v85
    %287 = vmatprep.subr.mxu0 0.0
    %288 = vmatpush1.msra.mxu0 %v86
    %289 = vmatprep.subr.mxu0 0.0
    %290 = vmatpush1.msra.mxu0 %v87
    %291 = vmatprep.subr.mxu0 0.0
    %292 = vmatpush1.msra.mxu0 %v88
    %293 = vmatprep.subr.mxu0 0.0
    %294 = vmatpush1.msra.mxu0 %v89
    %295 = vmatprep.subr.mxu0 0.0
    %296 = vmatpush1.msra.mxu0 %v90
    %297 = vmatprep.subr.mxu0 0.0
    %298 = vmatpush1.msra.mxu0 %v91
    %299 = vmatprep.subr.mxu0 0.0
    %300 = vmatpush1.msra.mxu0 %v92
    %301 = vmatprep.subr.mxu0 0.0
    %302 = vmatpush1.msra.mxu0 %v93
    %303 = vmatprep.subr.mxu0 0.0
    %304 = vmatpush1.msra.mxu0 %v94
    %305 = vmatprep.subr.mxu0 0.0
    %306 = vmatpush1.msra.mxu0 %v95
    %307 = vmatprep.mubr.f32.mxu0 %v216
    %308 = vmatmul.mubr.f32.gmra.mrb[0].mxu0 %v208
    %v309 = vpop.f32.mrb[0].mxu0
    %v310 = vadd.f32 %v197, %v309
    %v311 = vpop.f32.mrb[0].mxu0
    %312 = vdwg.mxu0
    %313 = vmatprep.subr.mxu0 0.0
    %314 = vmatpush1.msra.mxu0 %v96
    %315 = vmatprep.subr.mxu0 0.0
    %316 = vmatpush1.msra.mxu0 %v97
    %317 = vmatprep.subr.mxu0 0.0
    %318 = vmatpush1.msra.mxu0 %v98
    %319 = vmatprep.subr.mxu0 0.0
    %320 = vmatpush1.msra.mxu0 %v99
    %321 = vmatprep.subr.mxu0 0.0
    %322 = vmatpush1.msra.mxu0 %v100
    %323 = vmatprep.subr.mxu0 0.0
    %324 = vmatpush1.msra.mxu0 %v101
    %325 = vmatprep.subr.mxu0 0.0
    %326 = vmatpush1.msra.mxu0 %v102
    %327 = vmatprep.subr.mxu0 0.0
    %328 = vmatpush1.msra.mxu0 %v103
    %329 = vmatprep.subr.mxu0 0.0
    %330 = vmatpush1.msra.mxu0 %v104
    %331 = vmatprep.subr.mxu0 0.0
    %332 = vmatpush1.msra.mxu0 %v105
    %333 = vmatprep.subr.mxu0 0.0
    %334 = vmatpush1.msra.mxu0 %v106
    %335 = vmatprep.subr.mxu0 0.0
    %336 = vmatpush1.msra.mxu0 %v107
    %337 = vmatprep.subr.mxu0 0.0
    %338 = vmatpush1.msra.mxu0 %v108
    %339 = vmatprep.subr.mxu0 0.0
    %340 = vmatpush1.msra.mxu0 %v109
    %341 = vmatprep.subr.mxu0 0.0
    %342 = vmatpush1.msra.mxu0 %v110
    %343 = vmatprep.subr.mxu0 0.0
    %344 = vmatpush1.msra.mxu0 %v111
    %345 = vmatprep.subr.mxu0 0.0
    %346 = vmatpush1.msra.mxu0 %v112
    %347 = vmatprep.subr.mxu0 0.0
    %348 = vmatpush1.msra.mxu0 %v113
    %349 = vmatprep.subr.mxu0 0.0
    %350 = vmatpush1.msra.mxu0 %v114
    %351 = vmatprep.subr.mxu0 0.0
    %352 = vmatpush1.msra.mxu0 %v115
    %353 = vmatprep.subr.mxu0 0.0
    %354 = vmatpush1.msra.mxu0 %v116
    %355 = vmatprep.subr.mxu0 0.0
    %356 = vmatpush1.msra.mxu0 %v117
    %357 = vmatprep.subr.mxu0 0.0
    %358 = vmatpush1.msra.mxu0 %v118
    %359 = vmatprep.subr.mxu0 0.0
    %360 = vmatpush1.msra.mxu0 %v119
    %361 = vmatprep.subr.mxu0 0.0
    %362 = vmatpush1.msra.mxu0 %v120
    %363 = vmatprep.subr.mxu0 0.0
    %364 = vmatpush1.msra.mxu0 %v121
    %365 = vmatprep.subr.mxu0 0.0
    %366 = vmatpush1.msra.mxu0 %v122
    %367 = vmatprep.subr.mxu0 0.0
    %368 = vmatpush1.msra.mxu0 %v123
    %369 = vmatprep.subr.mxu0 0.0
    %370 = vmatpush1.msra.mxu0 %v124
    %371 = vmatprep.subr.mxu0 0.0
    %372 = vmatpush1.msra.mxu0 %v125
    %373 = vmatprep.subr.mxu0 0.0
    %374 = vmatpush1.msra.mxu0 %v126
    %375 = vmatprep.subr.mxu0 0.0
    %376 = vmatpush1.msra.mxu0 %v127
    %377 = vmatprep.mubr.f32.mxu0 %v217
    %378 = vmatmul.mubr.f32.gmra.mrb[0].mxu0 %v215
    %v379 = vpop.f32.mrb[0].mxu0
    %v380 = vadd.f32 %v310, %v379
    %v381 = vpop.f32.mrb[0].mxu0
    %382 = vdwg.mxu0
    %383 = vmatprep.subr.mxu0 0.0
    %384 = vmatpush1.msra.mxu0 %v128
    %385 = vmatprep.subr.mxu0 0.0
    %386 = vmatpush1.msra.mxu0 %v129
    %387 = vmatprep.subr.mxu0 0.0
    %388 = vmatpush1.msra.mxu0 %v130
    %389 = vmatprep.subr.mxu0 0.0
    %390 = vmatpush1.msra.mxu0 %v131
    %391 = vmatprep.subr.mxu0 0.0
    %392 = vmatpush1.msra.mxu0 %v132
    %393 = vmatprep.subr.mxu0 0.0
    %394 = vmatpush1.msra.mxu0 %v133
    %395 = vmatprep.subr.mxu0 0.0
    %396 = vmatpush1.msra.mxu0 %v134
    %397 = vmatprep.subr.mxu0 0.0
    %398 = vmatpush1.msra.mxu0 %v135
    %399 = vmatprep.subr.mxu0 0.0
    %400 = vmatpush1.msra.mxu0 %v136
    %401 = vmatprep.subr.mxu0 0.0
    %402 = vmatpush1.msra.mxu0 %v137
    %403 = vmatprep.subr.mxu0 0.0
    %404 = vmatpush1.msra.mxu0 %v138
    %405 = vmatprep.subr.mxu0 0.0
    %406 = vmatpush1.msra.mxu0 %v139
    %407 = vmatprep.subr.mxu0 0.0
    %408 = vmatpush1.msra.mxu0 %v140
    %409 = vmatprep.subr.mxu0 0.0
    %410 = vmatpush1.msra.mxu0 %v141
    %411 = vmatprep.subr.mxu0 0.0
    %412 = vmatpush1.msra.mxu0 %v142
    %413 = vmatprep.subr.mxu0 0.0
    %414 = vmatpush1.msra.mxu0 %v143
    %415 = vmatprep.subr.mxu0 0.0
    %416 = vmatpush1.msra.mxu0 %v144
    %417 = vmatprep.subr.mxu0 0.0
    %418 = vmatpush1.msra.mxu0 %v145
    %419 = vmatprep.subr.mxu0 0.0
    %420 = vmatpush1.msra.mxu0 %v146
    %421 = vmatprep.subr.mxu0 0.0
    %422 = vmatpush1.msra.mxu0 %v147
    %423 = vmatprep.subr.mxu0 0.0
    %424 = vmatpush1.msra.mxu0 %v148
    %425 = vmatprep.subr.mxu0 0.0
    %426 = vmatpush1.msra.mxu0 %v149
    %427 = vmatprep.subr.mxu0 0.0
    %428 = vmatpush1.msra.mxu0 %v150
    %429 = vmatprep.subr.mxu0 0.0
    %430 = vmatpush1.msra.mxu0 %v151
    %431 = vmatprep.subr.mxu0 0.0
    %432 = vmatpush1.msra.mxu0 %v152
    %433 = vmatprep.subr.mxu0 0.0
    %434 = vmatpush1.msra.mxu0 %v153
    %435 = vmatprep.subr.mxu0 0.0
    %436 = vmatpush1.msra.mxu0 %v154
    %437 = vmatprep.subr.mxu0 0.0
    %438 = vmatpush1.msra.mxu0 %v155
    %439 = vmatprep.subr.mxu0 0.0
    %440 = vmatpush1.msra.mxu0 %v156
    %441 = vmatprep.subr.mxu0 0.0
    %442 = vmatpush1.msra.mxu0 %v157
    %443 = vmatprep.subr.mxu0 0.0
    %444 = vmatpush1.msra.mxu0 %v158
    %445 = vmatprep.subr.mxu0 0.0
    %446 = vmatpush1.msra.mxu0 %v159
    %447 = vmatprep.mubr.f32.mxu0 %v233
    %448 = vmatmul.mubr.f32.gmra.mrb[0].mxu0 %v225
    %v449 = vpop.f32.mrb[0].mxu0
    %v450 = vadd.f32 %v380, %v449
    %v451 = vpop.f32.mrb[0].mxu0
    %452 = vdwg.mxu0
    %453 = vmatprep.subr.mxu0 0.0
    %454 = vmatpush1.msra.mxu0 %v160
    %455 = vmatprep.subr.mxu0 0.0
    %456 = vmatpush1.msra.mxu0 %v161
    %457 = vmatprep.subr.mxu0 0.0
    %458 = vmatpush1.msra.mxu0 %v162
    %459 = vmatprep.subr.mxu0 0.0
    %460 = vmatpush1.msra.mxu0 %v163
    %461 = vmatprep.subr.mxu0 0.0
    %462 = vmatpush1.msra.mxu0 %v164
    %463 = vmatprep.subr.mxu0 0.0
    %464 = vmatpush1.msra.mxu0 %v165
    %465 = vmatprep.subr.mxu0 0.0
    %466 = vmatpush1.msra.mxu0 %v166
    %467 = vmatprep.subr.mxu0 0.0
    %468 = vmatpush1.msra.mxu0 %v167
    %469 = vmatprep.subr.mxu0 0.0
    %470 = vmatpush1.msra.mxu0 %v168
    %471 = vmatprep.subr.mxu0 0.0
    %472 = vmatpush1.msra.mxu0 %v169
    %473 = vmatprep.subr.mxu0 0.0
    %474 = vmatpush1.msra.mxu0 %v170
    %475 = vmatprep.subr.mxu0 0.0
    %476 = vmatpush1.msra.mxu0 %v171
    %477 = vmatprep.subr.mxu0 0.0
    %478 = vmatpush1.msra.mxu0 %v172
    %479 = vmatprep.subr.mxu0 0.0
    %480 = vmatpush1.msra.mxu0 %v173
    %481 = vmatprep.subr.mxu0 0.0
    %482 = vmatpush1.msra.mxu0 %v174
    %483 = vmatprep.subr.mxu0 0.0
    %484 = vmatpush1.msra.mxu0 %v175
    %485 = vmatprep.subr.mxu0 0.0
    %486 = vmatpush1.msra.mxu0 %v176
    %487 = vmatprep.subr.mxu0 0.0
    %488 = vmatpush1.msra.mxu0 %v177
    %489 = vmatprep.subr.mxu0 0.0
    %490 = vmatpush1.msra.mxu0 %v178
    %491 = vmatprep.subr.mxu0 0.0
    %492 = vmatpush1.msra.mxu0 %v179
    %493 = vmatprep.subr.mxu0 0.0
    %494 = vmatpush1.msra.mxu0 %v180
    %495 = vmatprep.subr.mxu0 0.0
    %496 = vmatpush1.msra.mxu0 %v181
    %497 = vmatprep.subr.mxu0 0.0
    %498 = vmatpush1.msra.mxu0 %v182
    %499 = vmatprep.subr.mxu0 0.0
    %500 = vmatpush1.msra.mxu0 %v183
    %501 = vmatprep.subr.mxu0 0.0
    %502 = vmatpush1.msra.mxu0 %v184
    %503 = vmatprep.subr.mxu0 0.0
    %504 = vmatpush1.msra.mxu0 %v185
    %505 = vmatprep.subr.mxu0 0.0
    %506 = vmatpush1.msra.mxu0 %v186
    %507 = vmatprep.subr.mxu0 0.0
    %508 = vmatpush1.msra.mxu0 %v187
    %509 = vmatprep.subr.mxu0 0.0
    %510 = vmatpush1.msra.mxu0 %v188
    %511 = vmatprep.subr.mxu0 0.0
    %512 = vmatpush1.msra.mxu0 %v189
    %513 = vmatprep.subr.mxu0 0.0
    %514 = vmatpush1.msra.mxu0 %v190
    %515 = vmatprep.subr.mxu0 0.0
    %516 = vmatpush1.msra.mxu0 %v191
    %517 = vmatprep.mubr.f32.mxu0 %v234
    %518 = vmatmul.mubr.f32.gmra.mrb[0].mxu0 %v232
    %v519 = vpop.f32.mrb[0].mxu0
    %v520 = vadd.f32 %v450, %v519
    %v521 = vpop.f32.mrb[0].mxu0
    %522 = vdwg.mxu0
    %v523 = vmax.f32 %v520, 0.0
    %v524 = vpack.c.bf16 %v523, %v523
    %v525 = vld [vmem:[%s3] sm:$0xf]
    %v526 = vld [vmem:[%s3 + $0x4] sm:$0xf]
    %v527 = vld [vmem:[%s3 + $0x8] sm:$0xf]
    %v528 = vld [vmem:[%s3 + $0xc] sm:$0xf]
    %v529 = vld [vmem:[%s3 + $0x10] sm:$0xf]
    %v530 = vld [vmem:[%s3 + $0x14] sm:$0xf]
    %v531 = vld [vmem:[%s3 + $0x18] sm:$0xf]
    %v532 = vld [vmem:[%s3 + $0x1c] sm:$0xf]
    %v533 = vld [vmem:[%s3 + $0x20] sm:$0xf]
    %v534 = vld [vmem:[%s3 + $0x24] sm:$0xf]
    %v535 = vld [vmem:[%s3 + $0x28] sm:$0xf]
    %v536 = vld [vmem:[%s3 + $0x2c] sm:$0xf]
    %v537 = vld [vmem:[%s3 + $0x30] sm:$0xf]
    %v538 = vld [vmem:[%s3 + $0x34] sm:$0xf]
    %v539 = vld [vmem:[%s3 + $0x38] sm:$0xf]
    %v540 = vld [vmem:[%s3 + $0x3c] sm:$0xf]
    %v541 = vld [vmem:[%s4] sm:$0x1]
    %v543 = vlaneseq
    %v544 = vshrl.u32 %v543, 7
    %v545 = vsub.s32 0, %v544
    %v546 = vrot.slane %v541, %v545
    %v564 = vunpack.c.l.b16 %v525
    %v565 = vunpack.c.l.b16 %v526
    %v566 = vunpack.c.l.b16 %v527
    %v567 = vunpack.c.l.b16 %v528
    %v568 = vunpack.c.l.b16 %v529
    %v569 = vunpack.c.l.b16 %v530
    %v570 = vunpack.c.l.b16 %v531
    %v571 = vunpack.c.l.b16 %v532
    %v572 = vunpack.c.l.b16 %v533
    %v573 = vunpack.c.l.b16 %v534
    %v574 = vunpack.c.l.b16 %v535
    %v575 = vunpack.c.l.b16 %v536
    %v576 = vunpack.c.l.b16 %v537
    %v577 = vunpack.c.l.b16 %v538
    %v578 = vunpack.c.l.b16 %v539
    %v579 = vunpack.c.l.b16 %v540
    %v580 = vpack.c.b16 %v565, %v564
    %v581 = vpack.c.b16 %v567, %v566
    %v582 = vpack.c.b16 %v569, %v568
    %v583 = vpack.c.b16 %v571, %v570
    %v584 = vpack.c.b16 %v573, %v572
    %v585 = vpack.c.b16 %v575, %v574
    %v586 = vpack.c.b16 %v577, %v576
    %v587 = vpack.c.b16 %v579, %v578
    %596 = vmatprep.subr.bf16.mxu0 0
    %597 = vmatpush1.bf16.msra.mxu0 %v580
    %598 = vmatprep.subr.bf16.mxu0 0
    %599 = vmatpush1.bf16.msra.mxu0 %v581
    %600 = vmatprep.subr.bf16.mxu0 0
    %601 = vmatpush1.bf16.msra.mxu0 %v582
    %602 = vmatprep.subr.bf16.mxu0 0
    %603 = vmatpush1.bf16.msra.mxu0 %v583
    %604 = vmatprep.subr.bf16.mxu0 0
    %605 = vmatpush1.bf16.msra.mxu0 %v584
    %606 = vmatprep.subr.bf16.mxu0 0
    %607 = vmatpush1.bf16.msra.mxu0 %v585
    %608 = vmatprep.subr.bf16.mxu0 0
    %609 = vmatpush1.bf16.msra.mxu0 %v586
    %610 = vmatprep.subr.bf16.mxu0 0
    %611 = vmatpush1.bf16.msra.mxu0 %v587
    %612 = vmatprep.subr.bf16.mxu0 0
    %613 = vmatpush1.bf16.msra.mxu0 0
    %614 = vmatprep.subr.bf16.mxu0 0
    %615 = vmatpush1.bf16.msra.mxu0 0
    %616 = vmatprep.subr.bf16.mxu0 0
    %617 = vmatpush1.bf16.msra.mxu0 0
    %618 = vmatprep.subr.bf16.mxu0 0
    %619 = vmatpush1.bf16.msra.mxu0 0
    %620 = vmatprep.subr.bf16.mxu0 0
    %621 = vmatpush1.bf16.msra.mxu0 0
    %622 = vmatprep.subr.bf16.mxu0 0
    %623 = vmatpush1.bf16.msra.mxu0 0
    %624 = vmatprep.subr.bf16.mxu0 0
    %625 = vmatpush1.bf16.msra.mxu0 0
    %626 = vmatprep.subr.bf16.mxu0 0
    %627 = vmatpush1.bf16.msra.mxu0 0
    %628 = vmatprep.mubr.bf16.mxu0 0
    %629 = vmatmul.mubr.bf16.gmra.mrb[0].mxu0 %v524
    %v630 = vpop.f32.mrb[0].mxu0
    %v631 = vadd.f32 %v546, %v630
    %v632 = vpop.f32.mrb[0].mxu0
    %v633 = vpop.f32.mrb[0].mxu0
    %v634 = vpop.f32.mrb[0].mxu0
    %635 = vdwg.mxu0
    %v636 = vmax.f32 %v631, 0.0
    %v637 = vpack.c.bf16 %v636, %v636
    %v638 = vld [vmem:[%s5] sm:$0xf]
    %v639 = vld [vmem:[%s5 + $0x4] sm:$0xf]
    %v640 = vld [vmem:[%s5 + $0x8] sm:$0xf]
    %v641 = vld [vmem:[%s5 + $0xc] sm:$0xf]
    %v642 = vld [vmem:[%s5 + $0x10] sm:$0xf]
    %v643 = vld [vmem:[%s5 + $0x14] sm:$0xf]
    %v644 = vld [vmem:[%s5 + $0x18] sm:$0xf]
    %v645 = vld [vmem:[%s5 + $0x1c] sm:$0xf]
    %v646 = vld [vmem:[%s5 + $0x20] sm:$0xf]
    %v647 = vld [vmem:[%s5 + $0x24] sm:$0xf]
    %v648 = vld [vmem:[%s5 + $0x28] sm:$0xf]
    %v649 = vld [vmem:[%s5 + $0x2c] sm:$0xf]
    %v650 = vld [vmem:[%s5 + $0x30] sm:$0xf]
    %v651 = vld [vmem:[%s5 + $0x34] sm:$0xf]
    %v652 = vld [vmem:[%s5 + $0x38] sm:$0xf]
    %v653 = vld [vmem:[%s5 + $0x3c] sm:$0xf]
    %v654 = vld [vmem:[%s6] sm:$0x1]
    %v656 = vlaneseq
    %v657 = vshrl.u32 %v656, 7
    %v658 = vsub.s32 0, %v657
    %v659 = vrot.slane %v654, %v658
    %v677 = vunpack.c.l.b16 %v638
    %v678 = vunpack.c.l.b16 %v639
    %v679 = vunpack.c.l.b16 %v640
    %v680 = vunpack.c.l.b16 %v641
    %v681 = vunpack.c.l.b16 %v642
    %v682 = vunpack.c.l.b16 %v643
    %v683 = vunpack.c.l.b16 %v644
    %v684 = vunpack.c.l.b16 %v645
    %v685 = vunpack.c.l.b16 %v646
    %v686 = vunpack.c.l.b16 %v647
    %v687 = vunpack.c.l.b16 %v648
    %v688 = vunpack.c.l.b16 %v649
    %v689 = vunpack.c.l.b16 %v650
    %v690 = vunpack.c.l.b16 %v651
    %v691 = vunpack.c.l.b16 %v652
    %v692 = vunpack.c.l.b16 %v653
    %v693 = vpack.c.b16 %v678, %v677
    %v694 = vpack.c.b16 %v680, %v679
    %v695 = vpack.c.b16 %v682, %v681
    %v696 = vpack.c.b16 %v684, %v683
    %v697 = vpack.c.b16 %v686, %v685
    %v698 = vpack.c.b16 %v688, %v687
    %v699 = vpack.c.b16 %v690, %v689
    %v700 = vpack.c.b16 %v692, %v691
    %709 = vmatprep.subr.bf16.mxu0 0
    %710 = vmatpush1.bf16.msra.mxu0 %v693
    %711 = vmatprep.subr.bf16.mxu0 0
    %712 = vmatpush1.bf16.msra.mxu0 %v694
    %713 = vmatprep.subr.bf16.mxu0 0
    %714 = vmatpush1.bf16.msra.mxu0 %v695
    %715 = vmatprep.subr.bf16.mxu0 0
    %716 = vmatpush1.bf16.msra.mxu0 %v696
    %717 = vmatprep.subr.bf16.mxu0 0
    %718 = vmatpush1.bf16.msra.mxu0 %v697
    %719 = vmatprep.subr.bf16.mxu0 0
    %720 = vmatpush1.bf16.msra.mxu0 %v698
    %721 = vmatprep.subr.bf16.mxu0 0
    %722 = vmatpush1.bf16.msra.mxu0 %v699
    %723 = vmatprep.subr.bf16.mxu0 0
    %724 = vmatpush1.bf16.msra.mxu0 %v700
    %725 = vmatprep.subr.bf16.mxu0 0
    %726 = vmatpush1.bf16.msra.mxu0 0
    %727 = vmatprep.subr.bf16.mxu0 0
    %728 = vmatpush1.bf16.msra.mxu0 0
    %729 = vmatprep.subr.bf16.mxu0 0
    %730 = vmatpush1.bf16.msra.mxu0 0
    %731 = vmatprep.subr.bf16.mxu0 0
    %732 = vmatpush1.bf16.msra.mxu0 0
    %733 = vmatprep.subr.bf16.mxu0 0
    %734 = vmatpush1.bf16.msra.mxu0 0
    %735 = vmatprep.subr.bf16.mxu0 0
    %736 = vmatpush1.bf16.msra.mxu0 0
    %737 = vmatprep.subr.bf16.mxu0 0
    %738 = vmatpush1.bf16.msra.mxu0 0
    %739 = vmatprep.subr.bf16.mxu0 0
    %740 = vmatpush1.bf16.msra.mxu0 0
    %741 = vmatprep.mubr.bf16.mxu0 0
    %742 = vmatmul.mubr.bf16.gmra.mrb[0].mxu0 %v637
    %v743 = vpop.f32.mrb[0].mxu0
    %v744 = vadd.f32 %v659, %v743
    %v745 = vpop.f32.mrb[0].mxu0
    %v746 = vpop.f32.mrb[0].mxu0
    %v747 = vpop.f32.mrb[0].mxu0
    %748 = vdwg.mxu0
    %v749 = vmax.f32 %v744, 0.0
    %v750 = vpack.c.bf16 %v749, %v749
    %751 = vmatprep.subr.bf16.mxu0 0
    %752 = vmatpush1.bf16.msra.mxu0 %v580
    %753 = vmatprep.subr.bf16.mxu0 0
    %754 = vmatpush1.bf16.msra.mxu0 %v581
    %755 = vmatprep.subr.bf16.mxu0 0
    %756 = vmatpush1.bf16.msra.mxu0 %v582
    %757 = vmatprep.subr.bf16.mxu0 0
    %758 = vmatpush1.bf16.msra.mxu0 %v583
    %759 = vmatprep.subr.bf16.mxu0 0
    %760 = vmatpush1.bf16.msra.mxu0 %v584
    %761 = vmatprep.subr.bf16.mxu0 0
    %762 = vmatpush1.bf16.msra.mxu0 %v585
    %763 = vmatprep.subr.bf16.mxu0 0
    %764 = vmatpush1.bf16.msra.mxu0 %v586
    %765 = vmatprep.subr.bf16.mxu0 0
    %766 = vmatpush1.bf16.msra.mxu0 %v587
    %767 = vmatprep.subr.bf16.mxu0 0
    %768 = vmatpush1.bf16.msra.mxu0 0
    %769 = vmatprep.subr.bf16.mxu0 0
    %770 = vmatpush1.bf16.msra.mxu0 0
    %771 = vmatprep.subr.bf16.mxu0 0
    %772 = vmatpush1.bf16.msra.mxu0 0
    %773 = vmatprep.subr.bf16.mxu0 0
    %774 = vmatpush1.bf16.msra.mxu0 0
    %775 = vmatprep.subr.bf16.mxu0 0
    %776 = vmatpush1.bf16.msra.mxu0 0
    %777 = vmatprep.subr.bf16.mxu0 0
    %778 = vmatpush1.bf16.msra.mxu0 0
    %779 = vmatprep.subr.bf16.mxu0 0
    %780 = vmatpush1.bf16.msra.mxu0 0
    %781 = vmatprep.subr.bf16.mxu0 0
    %782 = vmatpush1.bf16.msra.mxu0 0
    %783 = vmatprep.mubr.bf16.mxu0 0
    %784 = vmatmul.mubr.bf16.gmra.mrb[0].mxu0 %v750
    %v785 = vpop.f32.mrb[0].mxu0
    %v786 = vadd.f32 %v546, %v785
    %v787 = vpop.f32.mrb[0].mxu0
    %v788 = vpop.f32.mrb[0].mxu0
    %v789 = vpop.f32.mrb[0].mxu0
    %790 = vdwg.mxu0
    %v791 = vmax.f32 %v786, 0.0
    %v792 = vpack.c.bf16 %v791, %v791
    %v793 = vld [vmem:[#allocation5] sm:$0xf]
    %v794 = vld [vmem:[#allocation5 + $0x4] sm:$0xf]
    %v795 = vld [vmem:[#allocation5 + $0x8] sm:$0xf]
    %v796 = vld [vmem:[#allocation5 + $0xc] sm:$0xf]
    %v797 = vld [vmem:[#allocation5 + $0x10] sm:$0xf]
    %v798 = vld [vmem:[#allocation5 + $0x14] sm:$0xf]
    %v799 = vld [vmem:[#allocation5 + $0x18] sm:$0xf]
    %v800 = vld [vmem:[#allocation5 + $0x1c] sm:$0xf]
    %v801 = vld [vmem:[#allocation5 + $0x20] sm:$0xf]
    %v802 = vld [vmem:[#allocation5 + $0x24] sm:$0xf]
    %v803 = vld [vmem:[#allocation5 + $0x28] sm:$0xf]
    %v804 = vld [vmem:[#allocation5 + $0x2c] sm:$0xf]
    %v805 = vld [vmem:[#allocation5 + $0x30] sm:$0xf]
    %v806 = vld [vmem:[#allocation5 + $0x34] sm:$0xf]
    %v807 = vld [vmem:[#allocation5 + $0x38] sm:$0xf]
    %v808 = vld [vmem:[#allocation5 + $0x3c] sm:$0xf]
    %v809 = vld [vmem:[%s8] sm:$0x1]
    %v811 = vlaneseq
    %v812 = vshrl.u32 %v811, 7
    %v813 = vsub.s32 0, %v812
    %v814 = vrot.slane %v809, %v813
    %v832 = vunpack.c.l.b16 %v793
    %v833 = vunpack.c.l.b16 %v794
    %v834 = vunpack.c.l.b16 %v795
    %v835 = vunpack.c.l.b16 %v796
    %v836 = vunpack.c.l.b16 %v797
    %v837 = vunpack.c.l.b16 %v798
    %v838 = vunpack.c.l.b16 %v799
    %v839 = vunpack.c.l.b16 %v800
    %v840 = vunpack.c.l.b16 %v801
    %v841 = vunpack.c.l.b16 %v802
    %v842 = vunpack.c.l.b16 %v803
    %v843 = vunpack.c.l.b16 %v804
    %v844 = vunpack.c.l.b16 %v805
    %v845 = vunpack.c.l.b16 %v806
    %v846 = vunpack.c.l.b16 %v807
    %v847 = vunpack.c.l.b16 %v808
    %v848 = vpack.c.b16 %v833, %v832
    %v849 = vpack.c.b16 %v835, %v834
    %v850 = vpack.c.b16 %v837, %v836
    %v851 = vpack.c.b16 %v839, %v838
    %v852 = vpack.c.b16 %v841, %v840
    %v853 = vpack.c.b16 %v843, %v842
    %v854 = vpack.c.b16 %v845, %v844
    %v855 = vpack.c.b16 %v847, %v846
    %864 = vmatprep.subr.bf16.mxu0 0
    %865 = vmatpush1.bf16.msra.mxu0 %v848
    %866 = vmatprep.subr.bf16.mxu0 0
    %867 = vmatpush1.bf16.msra.mxu0 %v849
    %868 = vmatprep.subr.bf16.mxu0 0
    %869 = vmatpush1.bf16.msra.mxu0 %v850
    %870 = vmatprep.subr.bf16.mxu0 0
    %871 = vmatpush1.bf16.msra.mxu0 %v851
    %872 = vmatprep.subr.bf16.mxu0 0
    %873 = vmatpush1.bf16.msra.mxu0 %v852
    %874 = vmatprep.subr.bf16.mxu0 0
    %875 = vmatpush1.bf16.msra.mxu0 %v853
    %876 = vmatprep.subr.bf16.mxu0 0
    %877 = vmatpush1.bf16.msra.mxu0 %v854
    %878 = vmatprep.subr.bf16.mxu0 0
    %879 = vmatpush1.bf16.msra.mxu0 %v855
    %880 = vmatprep.subr.bf16.mxu0 0
    %881 = vmatpush1.bf16.msra.mxu0 0
    %882 = vmatprep.subr.bf16.mxu0 0
    %883 = vmatpush1.bf16.msra.mxu0 0
    %884 = vmatprep.subr.bf16.mxu0 0
    %885 = vmatpush1.bf16.msra.mxu0 0
    %886 = vmatprep.subr.bf16.mxu0 0
    %887 = vmatpush1.bf16.msra.mxu0 0
    %888 = vmatprep.subr.bf16.mxu0 0
    %889 = vmatpush1.bf16.msra.mxu0 0
    %890 = vmatprep.subr.bf16.mxu0 0
    %891 = vmatpush1.bf16.msra.mxu0 0
    %892 = vmatprep.subr.bf16.mxu0 0
    %893 = vmatpush1.bf16.msra.mxu0 0
    %894 = vmatprep.subr.bf16.mxu0 0
    %895 = vmatpush1.bf16.msra.mxu0 0
    %896 = vmatprep.mubr.bf16.mxu0 0
    %897 = vmatmul.mubr.bf16.gmra.mrb[0].mxu0 %v792
    %v898 = vpop.f32.mrb[0].mxu0
    %v899 = vadd.f32 %v814, %v898
    %v900 = vpop.f32.mrb[0].mxu0
    %v901 = vpop.f32.mrb[0].mxu0
    %v902 = vpop.f32.mrb[0].mxu0
    %903 = vdwg.mxu0
    %904 = vst [vmem:[#allocation7] sm:$0x3] %v899
    // Predicated region
    $region46: #{mlp_shared_weights.1} parent=1 // pred_check
      _
    $region47: #{mlp_shared_weights.1} parent=1 // pred_check_branch
      %906 = sbr.rel (0) target = $region49
    $region48: #{mlp_shared_weights.1} parent=1 // pred_region
      %s908 = ssub.s32 32, 32
      %909 = vsyncadd [#allocation4], %s908
      %s911 = sshll.u32 [#allocation7], 4
      %s912 = int_to_ptr.vmem [resolvable:$true] %s911
      %914 = dma.vmem_to_hbm [thread:$0]  %s912, 32, %s9, [#allocation4]
    $region49: #{mlp_shared_weights.1} parent=1 // pred_fallthru
      _
    // Predicated region
    $region50: #{mlp_shared_weights.1} parent=1 // pred_check
      _
    $region51: #{mlp_shared_weights.1} parent=1 // pred_check_branch
      %916 = sbr.rel (0) target = $region53
    $region52: #{mlp_shared_weights.1} parent=1 // pred_region
      %917 = dma.done [#allocation4], 32
    $region53: #{mlp_shared_weights.1} parent=1 // pred_fallthru
      _
    %918 = vsyncpa [#allocation3], 1
    %919 = vsyncpa [#allocation6], 1
    %920 = vsyncpa [#allocation4], 1

</llo_original>
